<compile_context>
chip_gen: v6e
topology: v6e:2x2x1
jax: 0.10.0
libtpu: 0.0.40
codegen_flags: <defaults>
</compile_context>

<pallas_src>
import functools
import math

import jax
import jax.numpy as jnp
from jax.experimental import pallas as pl
from jax.experimental.pallas import tpu as pltpu


# ---------------------------------------------------------------------------
# Fused kernel: QKV projection + causal attention (all heads) + output proj.
# Grid: (B,) — one batch element per step.
# ---------------------------------------------------------------------------
def _mha_fused_kernel(x_ref, wqkv_ref, wp_ref, bp_ref, o_ref, *,
                      num_heads, head_size):
    T = x_ref.shape[1]
    H = head_size
    D = num_heads * head_size

    x = x_ref[0]                        # (T, C)      bf16
    w_qkv = wqkv_ref[...]               # (C, 3*D)    bf16

    # Fused QKV projection: one wide MXU matmul, f32 accumulate.
    qkv = jnp.dot(x, w_qkv, preferred_element_type=jnp.float32)   # (T, 3*D) f32

    scale = jnp.float32(1.0 / math.sqrt(H))

    # Causal mask indices (shared across heads).
    row = jax.lax.broadcasted_iota(jnp.int32, (T, T), 0)
    col = jax.lax.broadcasted_iota(jnp.int32, (T, T), 1)
    causal = col <= row

    head_outs = []
    for h in range(num_heads):          # static unroll over heads
        q = (qkv[:, h * H:(h + 1) * H] * scale).astype(jnp.bfloat16)        # (T,H)
        k = qkv[:, D + h * H:D + (h + 1) * H].astype(jnp.bfloat16)          # (T,H)
        v = qkv[:, 2 * D + h * H:2 * D + (h + 1) * H].astype(jnp.bfloat16)  # (T,H)

        # s = q @ k^T without an explicit transpose: contract on the H axis.
        s = jax.lax.dot_general(q, k, (((1,), (1,)), ((), ())),
                                preferred_element_type=jnp.float32)         # (T,T)
        s = jnp.where(causal, s, -jnp.inf)

        # Softmax in f32 (diagonal always unmasked -> no all -inf rows).
        s = s - jnp.max(s, axis=-1, keepdims=True)
        p = jnp.exp(s)
        inv = pl.reciprocal(jnp.sum(p, axis=-1, keepdims=True), approx=True)
        p = (p * inv).astype(jnp.bfloat16)

        head_outs.append(jnp.dot(p, v, preferred_element_type=jnp.float32))  # (T,H)

    # torch.cat([...], dim=-1): head h occupies columns [h*H : (h+1)*H].
    cat = jnp.concatenate(head_outs, axis=-1).astype(jnp.bfloat16)           # (T,D)

    # Fused output projection: y = cat @ Wp^T + b  (Wp pre-transposed to (D,E)).
    y = jnp.dot(cat, wp_ref[...], preferred_element_type=jnp.float32)
    y = y + bp_ref[...]
    o_ref[0] = y.astype(o_ref.dtype)


# ---------------------------------------------------------------------------
# Wrapper: packs per-head weights into the fused layout and calls the kernel.
# ---------------------------------------------------------------------------
def multi_head_attention(x, params, *, num_heads, head_size):
    wq, wk, wv, w_proj, b_proj = params
    B, T, C = x.shape
    D = num_heads * head_size
    E = w_proj.shape[0]

    # (NH, C, H) -> (C, NH*H) so column block [h*H:(h+1)*H] matches head h.
    def pack(w):
        return jnp.transpose(w, (1, 0, 2)).reshape(C, D)

    w_qkv = jnp.concatenate([pack(wq), pack(wk), pack(wv)], axis=1)   # (C, 3*D)

    x_bf = x.astype(jnp.bfloat16)
    w_qkv_bf = w_qkv.astype(jnp.bfloat16)
    wp_t_bf = jnp.transpose(w_proj).astype(jnp.bfloat16)              # (D, E)
    bp = b_proj.reshape(1, E).astype(jnp.float32)

    kernel = functools.partial(_mha_fused_kernel,
                               num_heads=num_heads, head_size=head_size)

    return pl.pallas_call(
        kernel,
        out_shape=jax.ShapeDtypeStruct((B, T, E), jnp.float32),
        grid=(B,),
        in_specs=[
            pl.BlockSpec((1, T, C), lambda b: (b, 0, 0)),
            pl.BlockSpec((C, 3 * D), lambda b: (0, 0)),
            pl.BlockSpec((D, E), lambda b: (0, 0)),
            pl.BlockSpec((1, E), lambda b: (0, 0)),
        ],
        out_specs=pl.BlockSpec((1, T, E), lambda b: (b, 0, 0)),
        compiler_params=pltpu.CompilerParams(
            dimension_semantics=("parallel",)),
    )(x_bf, w_qkv_bf, wp_t_bf, bp)


def init_params(key, num_heads, head_size, n_embd):
    kq, kk, kv, kp = jax.random.split(key, 4)
    std = 0.02
    # Per-head Linear(n_embd, head_size, bias=False) weights, stored (NH, C, H).
    wq = std * jax.random.normal(kq, (num_heads, n_embd, head_size), jnp.float32)
    wk = std * jax.random.normal(kk, (num_heads, n_embd, head_size), jnp.float32)
    wv = std * jax.random.normal(kv, (num_heads, n_embd, head_size), jnp.float32)
    # proj: nn.Linear(head_size*num_heads, n_embd), init_2 => N(0, 0.02), zero bias.
    w_proj = std * jax.random.normal(kp, (n_embd, num_heads * head_size), jnp.float32)
    b_proj = jnp.zeros((n_embd,), jnp.float32)
    return wq, wk, wv, w_proj, b_proj


if __name__ == "__main__":
    B, T = 2, 8                 # batch, sequence (block_size)
    n_embd = 32
    num_heads = 4
    head_size = 8

    key = jax.random.PRNGKey(0)
    kx, kp = jax.random.split(key)
    x = jax.random.normal(kx, (B, T, n_embd), jnp.float32)
    params = init_params(kp, num_heads, head_size, n_embd)

    out = multi_head_attention(x, params, num_heads=num_heads, head_size=head_size)
    jax.block_until_ready(out)
    assert out.shape == (B, T, n_embd), out.shape
    assert bool(jnp.all(jnp.isfinite(out))), "non-finite output"
    print("KERNEL_OK")
</pallas_src>

<mosaic_0001>
module attributes {stable_mosaic.version = 11 : i64} {
  func.func @_mha_fused_kernel(%arg0: i32, %arg1: memref<1x8x32xbf16, #tpu.memory_space<vmem>>, %arg2: memref<32x96xbf16, #tpu.memory_space<vmem>>, %arg3: memref<32x32xbf16, #tpu.memory_space<vmem>>, %arg4: memref<1x32xf32, #tpu.memory_space<vmem>>, %arg5: memref<1x8x32xf32, #tpu.memory_space<vmem>>) attributes {dimension_semantics = [#tpu.dimension_semantics<parallel>], iteration_bounds = array<i64: 2>, scalar_prefetch = 0 : i64, scratch_operands = 0 : i64, tpu.core_type = #tpu.core_type<tc>, window_params = [{transform_indices = @transform_0, window_bounds = array<i64: 1, 8, 32>}, {pipeline_mode = #tpu.pipeline_mode<synchronous>, transform_indices = @transform_1, window_bounds = array<i64: 32, 96>}, {pipeline_mode = #tpu.pipeline_mode<synchronous>, transform_indices = @transform_2, window_bounds = array<i64: 32, 32>}, {pipeline_mode = #tpu.pipeline_mode<synchronous>, transform_indices = @transform_3, window_bounds = array<i64: 1, 32>}, {transform_indices = @transform_4, window_bounds = array<i64: 1, 8, 32>}]} {
    %c0 = arith.constant 0 : index
    %c0_0 = arith.constant 0 : index
    %c0_1 = arith.constant 0 : index
    %0 = vector.load %arg1[%c0, %c0_0, %c0_1] : memref<1x8x32xbf16, #tpu.memory_space<vmem>>, vector<1x8x32xbf16>
    %1 = vector.shape_cast %0 : vector<1x8x32xbf16> to vector<8x32xbf16>
    %c0_2 = arith.constant 0 : index
    %c0_3 = arith.constant 0 : index
    %2 = vector.load %arg2[%c0_2, %c0_3] : memref<32x96xbf16, #tpu.memory_space<vmem>>, vector<32x96xbf16>
    %cst = arith.constant dense<0.000000e+00> : vector<8x96xf32>
    %3 = tpu.matmul %1, %2, %cst {dimension_numbers = #tpu.dot_dimension_numbers<[1], [0], [0], [1], [0, 0, 1, 1], [], []>} : vector<8x32xbf16>, vector<32x96xbf16>, vector<8x96xf32> -> vector<8x96xf32>
    %4 = tpu.iota {dimensions = array<i32: 0>} : vector<8x8xi32>
    %5 = tpu.iota {dimensions = array<i32: 1>} : vector<8x8xi32>
    %6 = arith.cmpi sle, %5, %4 : vector<8x8xi32>
    %7 = vector.extract_strided_slice %3 {offsets = [0, 0], sizes = [8, 8], strides = [1, 1]} : vector<8x96xf32> to vector<8x8xf32>
    %cst_4 = arith.constant 0.353553385 : f32
    %8 = vector.broadcast %cst_4 : f32 to vector<8x8xf32>
    %9 = arith.mulf %7, %8 : vector<8x8xf32>
    %10 = arith.truncf %9 : vector<8x8xf32> to vector<8x8xbf16>
    %11 = vector.extract_strided_slice %3 {offsets = [0, 32], sizes = [8, 8], strides = [1, 1]} : vector<8x96xf32> to vector<8x8xf32>
    %12 = arith.truncf %11 : vector<8x8xf32> to vector<8x8xbf16>
    %13 = vector.extract_strided_slice %3 {offsets = [0, 64], sizes = [8, 8], strides = [1, 1]} : vector<8x96xf32> to vector<8x8xf32>
    %14 = arith.truncf %13 : vector<8x8xf32> to vector<8x8xbf16>
    %cst_5 = arith.constant dense<0.000000e+00> : vector<8x8xf32>
    %15 = tpu.matmul %10, %12, %cst_5 {dimension_numbers = #tpu.dot_dimension_numbers<[1], [1], [0], [0], [0, 0, 1, 0], [], []>} : vector<8x8xbf16>, vector<8x8xbf16>, vector<8x8xf32> -> vector<8x8xf32>
    %cst_6 = arith.constant 0xFF800000 : f32
    %16 = vector.broadcast %cst_6 : f32 to vector<8x8xf32>
    %17 = arith.select %6, %15, %16 : vector<8x8xi1>, vector<8x8xf32>
    %cst_7 = arith.constant dense<0xFF800000> : vector<8xf32>
    %18 = vector.multi_reduction <maximumf>, %17, %cst_7 [1] : vector<8x8xf32> to vector<8xf32>
    %19 = vector.shape_cast %18 : vector<8xf32> to vector<8x1xf32>
    %20 = vector.broadcast %19 : vector<8x1xf32> to vector<8x8xf32>
    %21 = arith.subf %17, %20 : vector<8x8xf32>
    %22 = math.exp %21 : vector<8x8xf32>
    %cst_8 = arith.constant dense<0.000000e+00> : vector<8xf32>
    %23 = vector.multi_reduction <add>, %22, %cst_8 [1] : vector<8x8xf32> to vector<8xf32>
    %24 = vector.shape_cast %23 : vector<8xf32> to vector<8x1xf32>
    %25 = tpu.reciprocal %24 {approx = true} : vector<8x1xf32> -> vector<8x1xf32>
    %26 = vector.broadcast %25 : vector<8x1xf32> to vector<8x8xf32>
    %27 = arith.mulf %22, %26 : vector<8x8xf32>
    %28 = arith.truncf %27 : vector<8x8xf32> to vector<8x8xbf16>
    %cst_9 = arith.constant dense<0.000000e+00> : vector<8x8xf32>
    %29 = tpu.matmul %28, %14, %cst_9 {dimension_numbers = #tpu.dot_dimension_numbers<[1], [0], [0], [1], [0, 0, 1, 1], [], []>} : vector<8x8xbf16>, vector<8x8xbf16>, vector<8x8xf32> -> vector<8x8xf32>
    %30 = vector.extract_strided_slice %3 {offsets = [0, 8], sizes = [8, 8], strides = [1, 1]} : vector<8x96xf32> to vector<8x8xf32>
    %cst_10 = arith.constant 0.353553385 : f32
    %31 = vector.broadcast %cst_10 : f32 to vector<8x8xf32>
    %32 = arith.mulf %30, %31 : vector<8x8xf32>
    %33 = arith.truncf %32 : vector<8x8xf32> to vector<8x8xbf16>
    %34 = vector.extract_strided_slice %3 {offsets = [0, 40], sizes = [8, 8], strides = [1, 1]} : vector<8x96xf32> to vector<8x8xf32>
    %35 = arith.truncf %34 : vector<8x8xf32> to vector<8x8xbf16>
    %36 = vector.extract_strided_slice %3 {offsets = [0, 72], sizes = [8, 8], strides = [1, 1]} : vector<8x96xf32> to vector<8x8xf32>
    %37 = arith.truncf %36 : vector<8x8xf32> to vector<8x8xbf16>
    %cst_11 = arith.constant dense<0.000000e+00> : vector<8x8xf32>
    %38 = tpu.matmul %33, %35, %cst_11 {dimension_numbers = #tpu.dot_dimension_numbers<[1], [1], [0], [0], [0, 0, 1, 0], [], []>} : vector<8x8xbf16>, vector<8x8xbf16>, vector<8x8xf32> -> vector<8x8xf32>
    %cst_12 = arith.constant 0xFF800000 : f32
    %39 = vector.broadcast %cst_12 : f32 to vector<8x8xf32>
    %40 = arith.select %6, %38, %39 : vector<8x8xi1>, vector<8x8xf32>
    %cst_13 = arith.constant dense<0xFF800000> : vector<8xf32>
    %41 = vector.multi_reduction <maximumf>, %40, %cst_13 [1] : vector<8x8xf32> to vector<8xf32>
    %42 = vector.shape_cast %41 : vector<8xf32> to vector<8x1xf32>
    %43 = vector.broadcast %42 : vector<8x1xf32> to vector<8x8xf32>
    %44 = arith.subf %40, %43 : vector<8x8xf32>
    %45 = math.exp %44 : vector<8x8xf32>
    %cst_14 = arith.constant dense<0.000000e+00> : vector<8xf32>
    %46 = vector.multi_reduction <add>, %45, %cst_14 [1] : vector<8x8xf32> to vector<8xf32>
    %47 = vector.shape_cast %46 : vector<8xf32> to vector<8x1xf32>
    %48 = tpu.reciprocal %47 {approx = true} : vector<8x1xf32> -> vector<8x1xf32>
    %49 = vector.broadcast %48 : vector<8x1xf32> to vector<8x8xf32>
    %50 = arith.mulf %45, %49 : vector<8x8xf32>
    %51 = arith.truncf %50 : vector<8x8xf32> to vector<8x8xbf16>
    %cst_15 = arith.constant dense<0.000000e+00> : vector<8x8xf32>
    %52 = tpu.matmul %51, %37, %cst_15 {dimension_numbers = #tpu.dot_dimension_numbers<[1], [0], [0], [1], [0, 0, 1, 1], [], []>} : vector<8x8xbf16>, vector<8x8xbf16>, vector<8x8xf32> -> vector<8x8xf32>
    %53 = vector.extract_strided_slice %3 {offsets = [0, 16], sizes = [8, 8], strides = [1, 1]} : vector<8x96xf32> to vector<8x8xf32>
    %cst_16 = arith.constant 0.353553385 : f32
    %54 = vector.broadcast %cst_16 : f32 to vector<8x8xf32>
    %55 = arith.mulf %53, %54 : vector<8x8xf32>
    %56 = arith.truncf %55 : vector<8x8xf32> to vector<8x8xbf16>
    %57 = vector.extract_strided_slice %3 {offsets = [0, 48], sizes = [8, 8], strides = [1, 1]} : vector<8x96xf32> to vector<8x8xf32>
    %58 = arith.truncf %57 : vector<8x8xf32> to vector<8x8xbf16>
    %59 = vector.extract_strided_slice %3 {offsets = [0, 80], sizes = [8, 8], strides = [1, 1]} : vector<8x96xf32> to vector<8x8xf32>
    %60 = arith.truncf %59 : vector<8x8xf32> to vector<8x8xbf16>
    %cst_17 = arith.constant dense<0.000000e+00> : vector<8x8xf32>
    %61 = tpu.matmul %56, %58, %cst_17 {dimension_numbers = #tpu.dot_dimension_numbers<[1], [1], [0], [0], [0, 0, 1, 0], [], []>} : vector<8x8xbf16>, vector<8x8xbf16>, vector<8x8xf32> -> vector<8x8xf32>
    %cst_18 = arith.constant 0xFF800000 : f32
    %62 = vector.broadcast %cst_18 : f32 to vector<8x8xf32>
    %63 = arith.select %6, %61, %62 : vector<8x8xi1>, vector<8x8xf32>
    %cst_19 = arith.constant dense<0xFF800000> : vector<8xf32>
    %64 = vector.multi_reduction <maximumf>, %63, %cst_19 [1] : vector<8x8xf32> to vector<8xf32>
    %65 = vector.shape_cast %64 : vector<8xf32> to vector<8x1xf32>
    %66 = vector.broadcast %65 : vector<8x1xf32> to vector<8x8xf32>
    %67 = arith.subf %63, %66 : vector<8x8xf32>
    %68 = math.exp %67 : vector<8x8xf32>
    %cst_20 = arith.constant dense<0.000000e+00> : vector<8xf32>
    %69 = vector.multi_reduction <add>, %68, %cst_20 [1] : vector<8x8xf32> to vector<8xf32>
    %70 = vector.shape_cast %69 : vector<8xf32> to vector<8x1xf32>
    %71 = tpu.reciprocal %70 {approx = true} : vector<8x1xf32> -> vector<8x1xf32>
    %72 = vector.broadcast %71 : vector<8x1xf32> to vector<8x8xf32>
    %73 = arith.mulf %68, %72 : vector<8x8xf32>
    %74 = arith.truncf %73 : vector<8x8xf32> to vector<8x8xbf16>
    %cst_21 = arith.constant dense<0.000000e+00> : vector<8x8xf32>
    %75 = tpu.matmul %74, %60, %cst_21 {dimension_numbers = #tpu.dot_dimension_numbers<[1], [0], [0], [1], [0, 0, 1, 1], [], []>} : vector<8x8xbf16>, vector<8x8xbf16>, vector<8x8xf32> -> vector<8x8xf32>
    %76 = vector.extract_strided_slice %3 {offsets = [0, 24], sizes = [8, 8], strides = [1, 1]} : vector<8x96xf32> to vector<8x8xf32>
    %cst_22 = arith.constant 0.353553385 : f32
    %77 = vector.broadcast %cst_22 : f32 to vector<8x8xf32>
    %78 = arith.mulf %76, %77 : vector<8x8xf32>
    %79 = arith.truncf %78 : vector<8x8xf32> to vector<8x8xbf16>
    %80 = vector.extract_strided_slice %3 {offsets = [0, 56], sizes = [8, 8], strides = [1, 1]} : vector<8x96xf32> to vector<8x8xf32>
    %81 = arith.truncf %80 : vector<8x8xf32> to vector<8x8xbf16>
    %82 = vector.extract_strided_slice %3 {offsets = [0, 88], sizes = [8, 8], strides = [1, 1]} : vector<8x96xf32> to vector<8x8xf32>
    %83 = arith.truncf %82 : vector<8x8xf32> to vector<8x8xbf16>
    %cst_23 = arith.constant dense<0.000000e+00> : vector<8x8xf32>
    %84 = tpu.matmul %79, %81, %cst_23 {dimension_numbers = #tpu.dot_dimension_numbers<[1], [1], [0], [0], [0, 0, 1, 0], [], []>} : vector<8x8xbf16>, vector<8x8xbf16>, vector<8x8xf32> -> vector<8x8xf32>
    %cst_24 = arith.constant 0xFF800000 : f32
    %85 = vector.broadcast %cst_24 : f32 to vector<8x8xf32>
    %86 = arith.select %6, %84, %85 : vector<8x8xi1>, vector<8x8xf32>
    %cst_25 = arith.constant dense<0xFF800000> : vector<8xf32>
    %87 = vector.multi_reduction <maximumf>, %86, %cst_25 [1] : vector<8x8xf32> to vector<8xf32>
    %88 = vector.shape_cast %87 : vector<8xf32> to vector<8x1xf32>
    %89 = vector.broadcast %88 : vector<8x1xf32> to vector<8x8xf32>
    %90 = arith.subf %86, %89 : vector<8x8xf32>
    %91 = math.exp %90 : vector<8x8xf32>
    %cst_26 = arith.constant dense<0.000000e+00> : vector<8xf32>
    %92 = vector.multi_reduction <add>, %91, %cst_26 [1] : vector<8x8xf32> to vector<8xf32>
    %93 = vector.shape_cast %92 : vector<8xf32> to vector<8x1xf32>
    %94 = tpu.reciprocal %93 {approx = true} : vector<8x1xf32> -> vector<8x1xf32>
    %95 = vector.broadcast %94 : vector<8x1xf32> to vector<8x8xf32>
    %96 = arith.mulf %91, %95 : vector<8x8xf32>
    %97 = arith.truncf %96 : vector<8x8xf32> to vector<8x8xbf16>
    %cst_27 = arith.constant dense<0.000000e+00> : vector<8x8xf32>
    %98 = tpu.matmul %97, %83, %cst_27 {dimension_numbers = #tpu.dot_dimension_numbers<[1], [0], [0], [1], [0, 0, 1, 1], [], []>} : vector<8x8xbf16>, vector<8x8xbf16>, vector<8x8xf32> -> vector<8x8xf32>
    %99 = tpu.concatenate %29, %52, %75, %98 in 1 : vector<8x8xf32>, vector<8x8xf32>, vector<8x8xf32>, vector<8x8xf32> -> vector<8x32xf32>
    %100 = arith.truncf %99 : vector<8x32xf32> to vector<8x32xbf16>
    %c0_28 = arith.constant 0 : index
    %c0_29 = arith.constant 0 : index
    %101 = vector.load %arg3[%c0_28, %c0_29] : memref<32x32xbf16, #tpu.memory_space<vmem>>, vector<32x32xbf16>
    %cst_30 = arith.constant dense<0.000000e+00> : vector<8x32xf32>
    %102 = tpu.matmul %100, %101, %cst_30 {dimension_numbers = #tpu.dot_dimension_numbers<[1], [0], [0], [1], [0, 0, 1, 1], [], []>} : vector<8x32xbf16>, vector<32x32xbf16>, vector<8x32xf32> -> vector<8x32xf32>
    %c0_31 = arith.constant 0 : index
    %c0_32 = arith.constant 0 : index
    %103 = vector.load %arg4[%c0_31, %c0_32] : memref<1x32xf32, #tpu.memory_space<vmem>>, vector<1x32xf32>
    %104 = vector.broadcast %103 : vector<1x32xf32> to vector<8x32xf32>
    %105 = arith.addf %102, %104 : vector<8x32xf32>
    %c0_33 = arith.constant 0 : index
    %c0_34 = arith.constant 0 : index
    %c0_35 = arith.constant 0 : index
    %106 = vector.load %arg5[%c0_33, %c0_34, %c0_35] : memref<1x8x32xf32, #tpu.memory_space<vmem>>, vector<1x8x32xf32>
    %107 = vector.shape_cast %106 : vector<1x8x32xf32> to vector<8x32xf32>
    %108 = vector.shape_cast %105 : vector<8x32xf32> to vector<1x8x32xf32>
    tpu.vector_store %arg5[%c0_33, %c0_34, %c0_35], %108 {strides = array<i32>} : memref<1x8x32xf32, #tpu.memory_space<vmem>>, vector<1x8x32xf32>,
    return
  }
  func.func @transform_0(%arg0: i32) -> (i32, i32, i32) {
    %c0_i32 = arith.constant 0 : i32
    %c0_i32_0 = arith.constant 0 : i32
    %c0_i32_1 = arith.constant 0 : i32
    return %arg0, %c0_i32, %c0_i32_0 : i32, i32, i32
  }
  func.func @transform_1(%arg0: i32) -> (i32, i32) {
    %c0_i32 = arith.constant 0 : i32
    %c0_i32_0 = arith.constant 0 : i32
    %c0_i32_1 = arith.constant 0 : i32
    return %c0_i32, %c0_i32_0 : i32, i32
  }
  func.func @transform_2(%arg0: i32) -> (i32, i32) {
    %c0_i32 = arith.constant 0 : i32
    %c0_i32_0 = arith.constant 0 : i32
    %c0_i32_1 = arith.constant 0 : i32
    return %c0_i32, %c0_i32_0 : i32, i32
  }
  func.func @transform_3(%arg0: i32) -> (i32, i32) {
    %c0_i32 = arith.constant 0 : i32
    %c0_i32_0 = arith.constant 0 : i32
    %c0_i32_1 = arith.constant 0 : i32
    return %c0_i32, %c0_i32_0 : i32, i32
  }
  func.func @transform_4(%arg0: i32) -> (i32, i32, i32) {
    %c0_i32 = arith.constant 0 : i32
    %c0_i32_0 = arith.constant 0 : i32
    %c0_i32_1 = arith.constant 0 : i32
    return %arg0, %c0_i32, %c0_i32_0 : i32, i32, i32
  }
}

</mosaic_0001>

<llo_original>
// kernel: tpu_custom_call.1
$region0: #{tpu_custom_call.1}
  #allocation0 [shape = 'u32[]', space=smem, size = 0x4, offset = 0x4, fixed_abs, tag = 'smem constant byte address 0x4 - core index']
  #allocation1 [shape = 'u32[144,128]{1,0:T(1,128)}', space=vmem, size = 0x12000, scoped, tag = 'internal scratch']
  %s0 = inlined_call_operand.hbm [shape: bf16[2,8,32], index: 0, kind: input, shape index: {}]
  %s1 = inlined_call_operand.hbm [shape: bf16[32,96], index: 1, kind: input, shape index: {}]
  %s2 = inlined_call_operand.hbm [shape: bf16[32,32], index: 2, kind: input, shape index: {}]
  %s3 = inlined_call_operand.vmem [shape: f32[1,32], index: 3, kind: input, shape index: {}]
  %s4 = inlined_call_operand.hbm [shape: f32[2,8,32], index: 4, kind: output, shape index: {}]
  %s5 = sld [smem:[#allocation0]]
  $region61: #{tpu_custom_call.1} parent=0
    _
  %s7 = ssub.s32 1, %s5
  %s8 = scalar_select 0, %s7, %s5
  $region1: #{tpu_custom_call.1} parent=0
    #allocation2 [shape = 'u8[4096]{0}', space=vmem, size = 0x1000, scoped, tag = 'input window, operand 0']
    #allocation3 [shape = 's32[2]{0}', space=sflag, size = 0x8, scoped, tag = 'scoped memory for tpu_custom_call.1']
    #allocation4 [shape = 's32[2]{0}', space=sflag, size = 0x8, scoped, tag = 'scoped memory for tpu_custom_call.1']
    #allocation5 [shape = 'u8[8192]{0}', space=vmem, size = 0x2000, scoped, tag = 'input window, operand 1, single buffered']
    #allocation6 [shape = 's32[1]{0}', space=sflag, size = 0x4, scoped, tag = 'scoped memory for tpu_custom_call.1']
    #allocation7 [shape = 'u8[8192]{0}', space=vmem, size = 0x2000, scoped, tag = 'input window, operand 2, single buffered']
    #allocation8 [shape = 'u8[8192]{0}', space=vmem, size = 0x2000, scoped, tag = 'output window, operand 0']
    %9 = vsyncpa [#allocation3], 0
    %s10 = scalar_lea.sflag [#allocation3], 1
    %11 = vsyncpa %s10, 0
    %12 = vsyncpa [#allocation6], 0
    %13 = vsyncpa [#allocation4], 0
    %s14 = scalar_lea.sflag [#allocation4], 1
    %15 = vsyncpa %s14, 0
    loop: start=0, step=1, limit=4
    $region2: #{tpu_custom_call.1} parent=1 // loop_pre_header
      _
    $region3: #{tpu_custom_call.1} parent=1 // loop_header
      %s17 = sphi 0, %s21
      %p18 = scmp.ge.s32.totalorder %s17, 4
      %s27 = sphi 0, %s29
      %s30 = sphi 0, %s27
      %s31 = sphi 0, %s30
      %s47 = sphi 0, %s31
      %s51 = sphi 0, %s51
      %s53 = sphi 0, %s51
      %s54 = sphi 0, %s53
      %s68 = sphi 0, %s54
      %s72 = sphi 0, %s72
      %s74 = sphi 0, %s72
      %s75 = sphi 0, %s74
      %s89 = sphi 0, %s75
      %s93 = sphi 0, %s93
      %s95 = sphi 0, %s93
      %s96 = sphi 0, %s95
      %s110 = sphi 0, %s96
      %s116 = sphi 0, %s118
      %s119 = sphi 0, %s116
      %s120 = sphi 0, %s119
      %s136 = sphi 0, %s120
    $region4: #{tpu_custom_call.1} parent=1 // loop_header_branch
      %20 = sbr.rel (%p18) target = $region8
    $region5: #{tpu_custom_call.1} parent=1 // loop_body
      %s22 = ssub.s32 %s17, 1
      %s23 = ssub.s32 %s17, 2
      %s24 = sadd.s32 %s17, 1
      %s25 = ssub.s32 %s17, %s24
      %p26 = scmp.eq.s32.totalorder %s25, 0
      %s28 = sadd.s32 %s27, 1
      %s29 = scalar_select %p26, %s27, %s28
      %p32 = pneg %p26
      %p33 = scmp.eq.s32.totalorder %s17, 1
      %p34 = por %p32, %p33
      %p35 = scmp.ne.s32.totalorder %s27, %s30
      %p36 = scmp.eq.s32.totalorder %s17, 0
      %p37 = por %p35, %p36
      %p38 = scmp.ne.s32.totalorder %s27, %s30
      %p39 = scmp.eq.s32.totalorder %s22, 1
      %p40 = por %p38, %p39
      %p41 = scmp.ne.s32.totalorder %s30, %s31
      %p42 = scmp.eq.s32.totalorder %s22, 0
      %p43 = por %p41, %p42
      %p44 = scmp.ne.s32.totalorder %s30, %s31
      %p45 = scmp.eq.s32.totalorder %s23, 1
      %p46 = por %p44, %p45
      %p48 = scmp.ne.s32.totalorder %s31, %s47
      %p49 = scmp.eq.s32.totalorder %s23, 0
      %p50 = por %p48, %p49
      %s52 = sadd.s32 %s51, 1
      %p55 = scmp.eq.s32.totalorder %s17, 1
      %p56 = scmp.ne.s32.totalorder %s51, %s53
      %p57 = scmp.eq.s32.totalorder %s17, 0
      %p58 = por %p56, %p57
      %p59 = scmp.ne.s32.totalorder %s51, %s53
      %p60 = scmp.eq.s32.totalorder %s22, 1
      %p61 = por %p59, %p60
      %p62 = scmp.ne.s32.totalorder %s53, %s54
      %p63 = scmp.eq.s32.totalorder %s22, 0
      %p64 = por %p62, %p63
      %p65 = scmp.ne.s32.totalorder %s53, %s54
      %p66 = scmp.eq.s32.totalorder %s23, 1
      %p67 = por %p65, %p66
      %p69 = scmp.ne.s32.totalorder %s54, %s68
      %p70 = scmp.eq.s32.totalorder %s23, 0
      %p71 = por %p69, %p70
      %s73 = sadd.s32 %s72, 1
      %p76 = scmp.eq.s32.totalorder %s17, 1
      %p77 = scmp.ne.s32.totalorder %s72, %s74
      %p78 = scmp.eq.s32.totalorder %s17, 0
      %p79 = por %p77, %p78
      %p80 = scmp.ne.s32.totalorder %s72, %s74
      %p81 = scmp.eq.s32.totalorder %s22, 1
      %p82 = por %p80, %p81
      %p83 = scmp.ne.s32.totalorder %s74, %s75
      %p84 = scmp.eq.s32.totalorder %s22, 0
      %p85 = por %p83, %p84
      %p86 = scmp.ne.s32.totalorder %s74, %s75
      %p87 = scmp.eq.s32.totalorder %s23, 1
      %p88 = por %p86, %p87
      %p90 = scmp.ne.s32.totalorder %s75, %s89
      %p91 = scmp.eq.s32.totalorder %s23, 0
      %p92 = por %p90, %p91
      %s94 = sadd.s32 %s93, 1
      %p97 = scmp.eq.s32.totalorder %s17, 1
      %p98 = scmp.ne.s32.totalorder %s93, %s95
      %p99 = scmp.eq.s32.totalorder %s17, 0
      %p100 = por %p98, %p99
      %p101 = scmp.ne.s32.totalorder %s93, %s95
      %p102 = scmp.eq.s32.totalorder %s22, 1
      %p103 = por %p101, %p102
      %p104 = scmp.ne.s32.totalorder %s95, %s96
      %p105 = scmp.eq.s32.totalorder %s22, 0
      %p106 = por %p104, %p105
      %p107 = scmp.ne.s32.totalorder %s95, %s96
      %p108 = scmp.eq.s32.totalorder %s23, 1
      %p109 = por %p107, %p108
      %p111 = scmp.ne.s32.totalorder %s96, %s110
      %p112 = scmp.eq.s32.totalorder %s23, 0
      %p113 = por %p111, %p112
      %s114 = ssub.s32 %s17, %s24
      %p115 = scmp.eq.s32.totalorder %s114, 0
      %s117 = sadd.s32 %s116, 1
      %s118 = scalar_select %p115, %s116, %s117
      %p121 = pneg %p115
      %p122 = scmp.eq.s32.totalorder %s17, 1
      %p123 = por %p121, %p122
      %p124 = scmp.ne.s32.totalorder %s116, %s119
      %p125 = scmp.eq.s32.totalorder %s17, 0
      %p126 = por %p124, %p125
      %p127 = scmp.ne.s32.totalorder %s116, %s119
      %p128 = scmp.eq.s32.totalorder %s22, 1
      %p129 = por %p127, %p128
      %p130 = scmp.ne.s32.totalorder %s119, %s120
      %p131 = scmp.eq.s32.totalorder %s22, 0
      %p132 = por %p130, %p131
      %p133 = scmp.ne.s32.totalorder %s119, %s120
      %p134 = scmp.eq.s32.totalorder %s23, 1
      %p135 = por %p133, %p134
      %p137 = scmp.ne.s32.totalorder %s120, %s136
      %p138 = scmp.eq.s32.totalorder %s23, 0
      %p139 = por %p137, %p138
      %p140 = scmp.le.s32.totalorder 1, %s17
      %p141 = scmp.lt.s32.totalorder %s17, 3
      %p142 = pnand %p140, %p141
      %p143 = pneg %p142
      // Predicated region
      $region9: #{tpu_custom_call.1} parent=5 // pred_check
        _
      $region10: #{tpu_custom_call.1} parent=5 // pred_check_branch
        %145 = sbr.rel (%p142) target = $region12
      $region11: #{tpu_custom_call.1} parent=5 // pred_region
        %s146 = ssub.s32 %s17, 1
        // Predicated region
        $region13: #{tpu_custom_call.1} parent=11 // pred_check
          %p147 = pneg %p64
        $region14: #{tpu_custom_call.1} parent=11 // pred_check_branch
          %149 = sbr.rel (%p147) target = $region16
        $region15: #{tpu_custom_call.1} parent=11 // pred_region
          %s151 = ssub.s32 256, 256
          %152 = vsyncadd [#allocation6], %s151
          %s153 = sshll.u32 [#allocation5], 4
          %s154 = int_to_ptr.vmem [resolvable:$true] %s153
          %159 = dma.hbm_to_vmem [thread:$0]  %s1, 256, %s154, [#allocation6], 64, 64, 4
        $region16: #{tpu_custom_call.1} parent=11 // pred_fallthru
          _
        // Predicated region
        $region17: #{tpu_custom_call.1} parent=11 // pred_check
          %p160 = pneg %p85
        $region18: #{tpu_custom_call.1} parent=11 // pred_check_branch
          %162 = sbr.rel (%p160) target = $region20
        $region19: #{tpu_custom_call.1} parent=11 // pred_region
          %s164 = ssub.s32 256, 256
          %165 = vsyncadd [#allocation6], %s164
          %s166 = sshll.u32 [#allocation7], 4
          %s167 = int_to_ptr.vmem [resolvable:$true] %s166
          %172 = dma.hbm_to_vmem [thread:$0]  %s2, 256, %s167, [#allocation6], 64, 64, 4
        $region20: #{tpu_custom_call.1} parent=11 // pred_fallthru
          _
        // Predicated region
        $region21: #{tpu_custom_call.1} parent=11 // pred_check
          %p173 = pneg %p106
        $region22: #{tpu_custom_call.1} parent=11 // pred_check_branch
          %175 = sbr.rel (%p173) target = $region24
        $region23: #{tpu_custom_call.1} parent=11 // pred_region
          _
        $region24: #{tpu_custom_call.1} parent=11 // pred_fallthru
          _
      $region12: #{tpu_custom_call.1} parent=5 // pred_fallthru
        _
      %p176 = scmp.lt.s32.totalorder %s17, 2
      // Predicated region
      $region25: #{tpu_custom_call.1} parent=5 // pred_check
        %p177 = pneg %p176
      $region26: #{tpu_custom_call.1} parent=5 // pred_check_branch
        %179 = sbr.rel (%p177) target = $region28
      $region27: #{tpu_custom_call.1} parent=5 // pred_region
        // Predicated region
        $region29: #{tpu_custom_call.1} parent=27 // pred_check
          %p180 = pneg %p37
        $region30: #{tpu_custom_call.1} parent=27 // pred_check_branch
          %182 = sbr.rel (%p180) target = $region32
        $region31: #{tpu_custom_call.1} parent=27 // pred_region
          %s183 = sand.u32 %s27, 1
          %s184 = scalar_lea.sflag [#allocation3], %s183
          %s185 = sand.u32 %s27, 1
          %s186 = smul.addr %s185, 4
          %s187 = scalar_lea.vmem [#allocation2], %s186
          %s189 = ssub.s32 64, 64
          %190 = vsyncadd %s184, %s189
          %s191 = smul.addr %s17, 64
          %s192 = scalar_lea.hbm %s0, %s191
          %s194 = sshll.u32 %s187, 4
          %s195 = int_to_ptr.vmem [resolvable:$true] %s194
          %197 = dma.hbm_to_vmem [thread:$0]  %s192, 64, %s195, %s184
        $region32: #{tpu_custom_call.1} parent=27 // pred_fallthru
          _
      $region28: #{tpu_custom_call.1} parent=5 // pred_fallthru
        _
      %p198 = scmp.le.s32.totalorder 1, %s17
      %p199 = scmp.lt.s32.totalorder %s17, 3
      %p200 = pnand %p198, %p199
      %p201 = pneg %p200
      // Predicated region
      $region33: #{tpu_custom_call.1} parent=5 // pred_check
        _
      $region34: #{tpu_custom_call.1} parent=5 // pred_check_branch
        %203 = sbr.rel (%p200) target = $region36
      $region35: #{tpu_custom_call.1} parent=5 // pred_region
        %s204 = ssub.s32 %s17, 1
        %s205 = sand.u32 %s30, 1
        %s206 = scalar_lea.sflag [#allocation3], %s205
        %s207 = sand.u32 %s30, 1
        %s208 = smul.addr %s207, 4
        %s209 = scalar_lea.vmem [#allocation2], %s208
        // Predicated region
        $region37: #{tpu_custom_call.1} parent=35 // pred_check
          %p210 = pneg %p43
        $region38: #{tpu_custom_call.1} parent=35 // pred_check_branch
          %212 = sbr.rel (%p210) target = $region40
        $region39: #{tpu_custom_call.1} parent=35 // pred_region
          %213 = dma.done %s206, 64
        $region40: #{tpu_custom_call.1} parent=35 // pred_fallthru
          _
        // Predicated region
        $region41: #{tpu_custom_call.1} parent=35 // pred_check
          %p214 = pneg %p64
        $region42: #{tpu_custom_call.1} parent=35 // pred_check_branch
          %216 = sbr.rel (%p214) target = $region44
        $region43: #{tpu_custom_call.1} parent=35 // pred_region
          %217 = dma.done [#allocation6], 256
        $region44: #{tpu_custom_call.1} parent=35 // pred_fallthru
          _
        // Predicated region
        $region45: #{tpu_custom_call.1} parent=35 // pred_check
          %p218 = pneg %p85
        $region46: #{tpu_custom_call.1} parent=35 // pred_check_branch
          %220 = sbr.rel (%p218) target = $region48
        $region47: #{tpu_custom_call.1} parent=35 // pred_region
          %221 = dma.done [#allocation6], 256
        $region48: #{tpu_custom_call.1} parent=35 // pred_fallthru
          _
        %s222 = sand.u32 %s30, 1
        %s223 = scalar_lea.sflag [#allocation3], %s222
        %s224 = sand.u32 %s30, 1
        %s225 = smul.addr %s224, 4
        %s226 = scalar_lea.vmem [#allocation2], %s225
        %p227 = pneg %p43
        %p228 = pneg %p40
        %p229 = pneg %p64
        %p230 = pneg %p61
        %p231 = pneg %p85
        %p232 = pneg %p82
        %p233 = pneg %p106
        %p234 = pneg %p103
        %p235 = pneg %p132
        %p236 = pneg %p129
        %s237 = sand.u32 %s119, 1
        %s238 = scalar_lea.sflag [#allocation4], %s237
        %s239 = sand.u32 %s119, 1
        %s240 = smul.addr %s239, 8
        %s241 = scalar_lea.vmem [#allocation8], %s240
        %v243 = vld [vmem:[%s209] sm:$0xf]
        %v244 = vld [vmem:[#allocation5] sm:$0xf]
        %v245 = vld [vmem:[#allocation5 + $0x4] sm:$0xf]
        %v246 = vld [vmem:[#allocation5 + $0x8] sm:$0xf]
        %v247 = vld [vmem:[#allocation5 + $0xc] sm:$0xf]
        %v252 = vunpack.c.l.b16 %v244
        %v253 = vunpack.c.l.b16 %v245
        %v254 = vunpack.c.l.b16 %v246
        %v255 = vunpack.c.l.b16 %v247
        %v256 = vpack.c.b16 %v253, %v252
        %v257 = vpack.c.b16 %v255, %v254
        %vm260 = vcmask 261120
        %v262 = vsel %vm260, %v243, 0
        %264 = vmatprep.subr.bf16.mxu0 0
        %265 = vmatpush1.bf16.msra.mxu0 0
        %266 = vmatprep.subr.bf16.mxu0 0
        %267 = vmatpush1.bf16.msra.mxu0 0
        %268 = vmatprep.subr.bf16.mxu0 0
        %269 = vmatpush1.bf16.msra.mxu0 0
        %270 = vmatprep.subr.bf16.mxu0 0
        %271 = vmatpush1.bf16.msra.mxu0 0
        %272 = vmatprep.subr.bf16.mxu0 0
        %273 = vmatpush1.bf16.msra.mxu0 0
        %274 = vmatprep.subr.bf16.mxu0 0
        %275 = vmatpush1.bf16.msra.mxu0 0
        %276 = vmatprep.subr.bf16.mxu0 0
        %277 = vmatpush1.bf16.msra.mxu0 %v257
        %278 = vmatprep.subr.bf16.mxu0 0
        %279 = vmatpush1.bf16.msra.mxu0 %v256
        %280 = vmatprep.subr.bf16.mxu0 0
        %281 = vmatpush2.bf16.msra.mxu0 0
        %282 = vmatprep.subr.bf16.mxu0 0
        %283 = vmatpush2.bf16.msra.mxu0 0
        %284 = vmatprep.subr.bf16.mxu0 0
        %285 = vmatpush2.bf16.msra.mxu0 0
        %286 = vmatprep.subr.bf16.mxu0 0
        %287 = vmatpush2.bf16.msra.mxu0 0
        %288 = vmatprep.subr.bf16.mxu0 0
        %289 = vmatpush2.bf16.msra.mxu0 0
        %290 = vmatprep.subr.bf16.mxu0 0
        %291 = vmatpush2.bf16.msra.mxu0 0
        %292 = vmatprep.subr.bf16.mxu0 0
        %293 = vmatpush2.bf16.msra.mxu0 0
        %294 = vmatprep.subr.bf16.mxu0 0
        %295 = vmatpush2.bf16.msra.mxu0 0
        %296 = vmatprep.mubr.bf16.mxu0 0
        %297 = vmatmul.mubr.bf16.gmra.mxu0 %v262
        %v298 = vpop.f32.mrf.mxu0
        %v299 = vadd.f32 0.0, %v298
        %v300 = vpop.f32.mrf.mxu0
        %v301 = vpop.f32.mrf.mxu0
        %v302 = vpop.f32.mrf.mxu0
        %303 = vdwg.mxu0
        %v304 = vlaneseq
        %v305 = vshrl.u32 %v304, 7
        %v306 = vlaneseq
        %v307 = vand.u32 %v306, 127
        %vm308 = vcmp.le.s32.totalorder %v307, %v305
        %v309 = vmul.f32 %v299, 0.35355338
        %v310 = vpack.c.bf16 %v309, %v309
        %v311 = vpack.c.bf16 %v299, %v299
        %313 = vrot.lane.b32.xlu0 %v311, 96
        %v314 = vpop.permute.xlu0 %313
        %vm315 = vcmask 64512
        %v317 = vsel %vm315, %v310, 0
        %v320 = vsel %vm315, %v314, 0
        %322 = vmatprep.subr.bf16.mxu0 0
        %323 = vmatpush1.bf16.xpose.msra.mxu0 0
        %324 = vmatprep.subr.bf16.mxu0 0
        %325 = vmatpush1.bf16.xpose.msra.mxu0 0
        %326 = vmatprep.subr.bf16.mxu0 0
        %327 = vmatpush1.bf16.xpose.msra.mxu0 0
        %328 = vmatprep.subr.bf16.mxu0 0
        %329 = vmatpush1.bf16.xpose.msra.mxu0 0
        %330 = vmatprep.subr.bf16.mxu0 0
        %331 = vmatpush1.bf16.xpose.msra.mxu0 0
        %332 = vmatprep.subr.bf16.mxu0 0
        %333 = vmatpush1.bf16.xpose.msra.mxu0 0
        %334 = vmatprep.subr.bf16.mxu0 0
        %335 = vmatpush1.bf16.xpose.msra.mxu0 0
        %336 = vmatprep.subr.bf16.mxu0 0
        %337 = vmatpush1.bf16.xpose.msra.mxu0 %v320
        %338 = vmatprep.subr.bf16.mxu0 0
        %339 = vmatpush2.bf16.xpose.msra.mxu0 0
        %340 = vmatprep.subr.bf16.mxu0 0
        %341 = vmatpush2.bf16.xpose.msra.mxu0 0
        %342 = vmatprep.subr.bf16.mxu0 0
        %343 = vmatpush2.bf16.xpose.msra.mxu0 0
        %344 = vmatprep.subr.bf16.mxu0 0
        %345 = vmatpush2.bf16.xpose.msra.mxu0 0
        %346 = vmatprep.subr.bf16.mxu0 0
        %347 = vmatpush2.bf16.xpose.msra.mxu0 0
        %348 = vmatprep.subr.bf16.mxu0 0
        %349 = vmatpush2.bf16.xpose.msra.mxu0 0
        %350 = vmatprep.subr.bf16.mxu0 0
        %351 = vmatpush2.bf16.xpose.msra.mxu0 0
        %352 = vmatprep.subr.bf16.mxu0 0
        %353 = vmatpush2.bf16.xpose.msra.mxu0 0
        %354 = vmatprep.mubr.bf16.mxu0 0
        %355 = vmatmul.mubr.bf16.gmra.mxu0 %v317
        %v356 = vpop.f32.mrf.mxu0
        %v357 = vadd.f32 0.0, %v356
        %v358 = vpop.f32.mrf.mxu0
        %v359 = vpop.f32.mrf.mxu0
        %v360 = vpop.f32.mrf.mxu0
        %361 = vdwg.mxu0
        %v362 = vsel %vm308, %v357, -inf
        %v363 = vsel %vm315, %v362, -inf
        %364 = vmax.xlane.f32.xlu0 %v363
        %v365 = vpop.xlane.xlu0 %364
        %v366 = vsub.f32 %v362, %v365
        %v367 = vmul.f32 %v366, 1.442695
        %v368 = vpow.pop %v367
        %v369 = vsel %vm315, %v368, 0.0
        %370 = vadd.xlane.f32.xlu0 %v369
        %v371 = vpop.xlane.xlu0 %370
        %v372 = vrcp.pop %v371
        %v373 = vmul.f32 %v368, %v372
        %v374 = vpack.c.bf16 %v373, %v373
        %375 = vrot.lane.b32.xlu0 %v311, 64
        %v376 = vpop.permute.xlu0 %375
        %v378 = vsel %vm315, %v374, 0
        %vm380 = vcmask 1043456
        %v382 = vsel %vm380, %v376, 0
        %384 = vmatprep.subr.bf16.mxu0 0
        %385 = vmatpush1.bf16.msra.mxu0 0
        %386 = vmatprep.subr.bf16.mxu0 0
        %387 = vmatpush1.bf16.msra.mxu0 0
        %388 = vmatprep.subr.bf16.mxu0 0
        %389 = vmatpush1.bf16.msra.mxu0 0
        %390 = vmatprep.subr.bf16.mxu0 0
        %391 = vmatpush1.bf16.msra.mxu0 0
        %392 = vmatprep.subr.bf16.mxu0 0
        %393 = vmatpush1.bf16.msra.mxu0 0
        %394 = vmatprep.subr.bf16.mxu0 0
        %395 = vmatpush1.bf16.msra.mxu0 0
        %396 = vmatprep.subr.bf16.mxu0 0
        %397 = vmatpush1.bf16.msra.mxu0 0
        %398 = vmatprep.subr.bf16.mxu0 0
        %399 = vmatpush1.bf16.msra.mxu0 %v382
        %400 = vmatprep.subr.bf16.mxu0 0
        %401 = vmatpush2.bf16.msra.mxu0 0
        %402 = vmatprep.subr.bf16.mxu0 0
        %403 = vmatpush2.bf16.msra.mxu0 0
        %404 = vmatprep.subr.bf16.mxu0 0
        %405 = vmatpush2.bf16.msra.mxu0 0
        %406 = vmatprep.subr.bf16.mxu0 0
        %407 = vmatpush2.bf16.msra.mxu0 0
        %408 = vmatprep.subr.bf16.mxu0 0
        %409 = vmatpush2.bf16.msra.mxu0 0
        %410 = vmatprep.subr.bf16.mxu0 0
        %411 = vmatpush2.bf16.msra.mxu0 0
        %412 = vmatprep.subr.bf16.mxu0 0
        %413 = vmatpush2.bf16.msra.mxu0 0
        %414 = vmatprep.subr.bf16.mxu0 0
        %415 = vmatpush2.bf16.msra.mxu0 0
        %416 = vmatprep.mubr.bf16.mxu0 0
        %417 = vmatmul.mubr.bf16.gmra.mxu0 %v378
        %v418 = vpop.f32.mrf.mxu0
        %v419 = vadd.f32 0.0, %v418
        %v420 = vpop.f32.mrf.mxu0
        %v421 = vpop.f32.mrf.mxu0
        %v422 = vpop.f32.mrf.mxu0
        %423 = vdwg.mxu0
        %425 = vrot.lane.b32.xlu0 %v310, 120
        %v426 = vpop.permute.xlu0 %425
        %427 = vrot.lane.b32.xlu0 %v311, 88
        %v428 = vpop.permute.xlu0 %427
        %v430 = vsel %vm315, %v426, 0
        %v433 = vsel %vm315, %v428, 0
        %435 = vmatprep.subr.bf16.mxu0 0
        %436 = vmatpush1.bf16.xpose.msra.mxu0 0
        %437 = vmatprep.subr.bf16.mxu0 0
        %438 = vmatpush1.bf16.xpose.msra.mxu0 0
        %439 = vmatprep.subr.bf16.mxu0 0
        %440 = vmatpush1.bf16.xpose.msra.mxu0 0
        %441 = vmatprep.subr.bf16.mxu0 0
        %442 = vmatpush1.bf16.xpose.msra.mxu0 0
        %443 = vmatprep.subr.bf16.mxu0 0
        %444 = vmatpush1.bf16.xpose.msra.mxu0 0
        %445 = vmatprep.subr.bf16.mxu0 0
        %446 = vmatpush1.bf16.xpose.msra.mxu0 0
        %447 = vmatprep.subr.bf16.mxu0 0
        %448 = vmatpush1.bf16.xpose.msra.mxu0 0
        %449 = vmatprep.subr.bf16.mxu0 0
        %450 = vmatpush1.bf16.xpose.msra.mxu0 %v433
        %451 = vmatprep.subr.bf16.mxu0 0
        %452 = vmatpush2.bf16.xpose.msra.mxu0 0
        %453 = vmatprep.subr.bf16.mxu0 0
        %454 = vmatpush2.bf16.xpose.msra.mxu0 0
        %455 = vmatprep.subr.bf16.mxu0 0
        %456 = vmatpush2.bf16.xpose.msra.mxu0 0
        %457 = vmatprep.subr.bf16.mxu0 0
        %458 = vmatpush2.bf16.xpose.msra.mxu0 0
        %459 = vmatprep.subr.bf16.mxu0 0
        %460 = vmatpush2.bf16.xpose.msra.mxu0 0
        %461 = vmatprep.subr.bf16.mxu0 0
        %462 = vmatpush2.bf16.xpose.msra.mxu0 0
        %463 = vmatprep.subr.bf16.mxu0 0
        %464 = vmatpush2.bf16.xpose.msra.mxu0 0
        %465 = vmatprep.subr.bf16.mxu0 0
        %466 = vmatpush2.bf16.xpose.msra.mxu0 0
        %467 = vmatprep.mubr.bf16.mxu0 0
        %468 = vmatmul.mubr.bf16.gmra.mxu0 %v430
        %v469 = vpop.f32.mrf.mxu0
        %v470 = vadd.f32 0.0, %v469
        %v471 = vpop.f32.mrf.mxu0
        %v472 = vpop.f32.mrf.mxu0
        %v473 = vpop.f32.mrf.mxu0
        %474 = vdwg.mxu0
        %v475 = vsel %vm308, %v470, -inf
        %v476 = vsel %vm315, %v475, -inf
        %477 = vmax.xlane.f32.xlu0 %v476
        %v478 = vpop.xlane.xlu0 %477
        %v479 = vsub.f32 %v475, %v478
        %v480 = vmul.f32 %v479, 1.442695
        %v481 = vpow.pop %v480
        %v482 = vsel %vm315, %v481, 0.0
        %483 = vadd.xlane.f32.xlu0 %v482
        %v484 = vpop.xlane.xlu0 %483
        %v485 = vrcp.pop %v484
        %v486 = vmul.f32 %v481, %v485
        %v487 = vpack.c.bf16 %v486, %v486
        %488 = vrot.lane.b32.xlu0 %v311, 56
        %v489 = vpop.permute.xlu0 %488
        %v491 = vsel %vm315, %v487, 0
        %v494 = vsel %vm380, %v489, 0
        %496 = vmatprep.subr.bf16.mxu0 0
        %497 = vmatpush1.bf16.msra.mxu0 0
        %498 = vmatprep.subr.bf16.mxu0 0
        %499 = vmatpush1.bf16.msra.mxu0 0
        %500 = vmatprep.subr.bf16.mxu0 0
        %501 = vmatpush1.bf16.msra.mxu0 0
        %502 = vmatprep.subr.bf16.mxu0 0
        %503 = vmatpush1.bf16.msra.mxu0 0
        %504 = vmatprep.subr.bf16.mxu0 0
        %505 = vmatpush1.bf16.msra.mxu0 0
        %506 = vmatprep.subr.bf16.mxu0 0
        %507 = vmatpush1.bf16.msra.mxu0 0
        %508 = vmatprep.subr.bf16.mxu0 0
        %509 = vmatpush1.bf16.msra.mxu0 0
        %510 = vmatprep.subr.bf16.mxu0 0
        %511 = vmatpush1.bf16.msra.mxu0 %v494
        %512 = vmatprep.subr.bf16.mxu0 0
        %513 = vmatpush2.bf16.msra.mxu0 0
        %514 = vmatprep.subr.bf16.mxu0 0
        %515 = vmatpush2.bf16.msra.mxu0 0
        %516 = vmatprep.subr.bf16.mxu0 0
        %517 = vmatpush2.bf16.msra.mxu0 0
        %518 = vmatprep.subr.bf16.mxu0 0
        %519 = vmatpush2.bf16.msra.mxu0 0
        %520 = vmatprep.subr.bf16.mxu0 0
        %521 = vmatpush2.bf16.msra.mxu0 0
        %522 = vmatprep.subr.bf16.mxu0 0
        %523 = vmatpush2.bf16.msra.mxu0 0
        %524 = vmatprep.subr.bf16.mxu0 0
        %525 = vmatpush2.bf16.msra.mxu0 0
        %526 = vmatprep.subr.bf16.mxu0 0
        %527 = vmatpush2.bf16.msra.mxu0 0
        %528 = vmatprep.mubr.bf16.mxu0 0
        %529 = vmatmul.mubr.bf16.gmra.mxu0 %v491
        %v530 = vpop.f32.mrf.mxu0
        %v531 = vadd.f32 0.0, %v530
        %v532 = vpop.f32.mrf.mxu0
        %v533 = vpop.f32.mrf.mxu0
        %v534 = vpop.f32.mrf.mxu0
        %535 = vdwg.mxu0
        %536 = vrot.lane.b32.xlu0 %v310, 112
        %v537 = vpop.permute.xlu0 %536
        %538 = vrot.lane.b32.xlu0 %v311, 80
        %v539 = vpop.permute.xlu0 %538
        %v541 = vsel %vm315, %v537, 0
        %v544 = vsel %vm315, %v539, 0
        %546 = vmatprep.subr.bf16.mxu0 0
        %547 = vmatpush1.bf16.xpose.msra.mxu0 0
        %548 = vmatprep.subr.bf16.mxu0 0
        %549 = vmatpush1.bf16.xpose.msra.mxu0 0
        %550 = vmatprep.subr.bf16.mxu0 0
        %551 = vmatpush1.bf16.xpose.msra.mxu0 0
        %552 = vmatprep.subr.bf16.mxu0 0
        %553 = vmatpush1.bf16.xpose.msra.mxu0 0
        %554 = vmatprep.subr.bf16.mxu0 0
        %555 = vmatpush1.bf16.xpose.msra.mxu0 0
        %556 = vmatprep.subr.bf16.mxu0 0
        %557 = vmatpush1.bf16.xpose.msra.mxu0 0
        %558 = vmatprep.subr.bf16.mxu0 0
        %559 = vmatpush1.bf16.xpose.msra.mxu0 0
        %560 = vmatprep.subr.bf16.mxu0 0
        %561 = vmatpush1.bf16.xpose.msra.mxu0 %v544
        %562 = vmatprep.subr.bf16.mxu0 0
        %563 = vmatpush2.bf16.xpose.msra.mxu0 0
        %564 = vmatprep.subr.bf16.mxu0 0
        %565 = vmatpush2.bf16.xpose.msra.mxu0 0
        %566 = vmatprep.subr.bf16.mxu0 0
        %567 = vmatpush2.bf16.xpose.msra.mxu0 0
        %568 = vmatprep.subr.bf16.mxu0 0
        %569 = vmatpush2.bf16.xpose.msra.mxu0 0
        %570 = vmatprep.subr.bf16.mxu0 0
        %571 = vmatpush2.bf16.xpose.msra.mxu0 0
        %572 = vmatprep.subr.bf16.mxu0 0
        %573 = vmatpush2.bf16.xpose.msra.mxu0 0
        %574 = vmatprep.subr.bf16.mxu0 0
        %575 = vmatpush2.bf16.xpose.msra.mxu0 0
        %576 = vmatprep.subr.bf16.mxu0 0
        %577 = vmatpush2.bf16.xpose.msra.mxu0 0
        %578 = vmatprep.mubr.bf16.mxu0 0
        %579 = vmatmul.mubr.bf16.gmra.mxu0 %v541
        %v580 = vpop.f32.mrf.mxu0
        %v581 = vadd.f32 0.0, %v580
        %v582 = vpop.f32.mrf.mxu0
        %v583 = vpop.f32.mrf.mxu0
        %v584 = vpop.f32.mrf.mxu0
        %585 = vdwg.mxu0
        %v586 = vsel %vm308, %v581, -inf
        %v587 = vsel %vm315, %v586, -inf
        %588 = vmax.xlane.f32.xlu0 %v587
        %v589 = vpop.xlane.xlu0 %588
        %v590 = vsub.f32 %v586, %v589
        %v591 = vmul.f32 %v590, 1.442695
        %v592 = vpow.pop %v591
        %v593 = vsel %vm315, %v592, 0.0
        %594 = vadd.xlane.f32.xlu0 %v593
        %v595 = vpop.xlane.xlu0 %594
        %v596 = vrcp.pop %v595
        %v597 = vmul.f32 %v592, %v596
        %v598 = vpack.c.bf16 %v597, %v597
        %599 = vrot.lane.b32.xlu0 %v311, 48
        %v600 = vpop.permute.xlu0 %599
        %v602 = vsel %vm315, %v598, 0
        %v605 = vsel %vm380, %v600, 0
        %607 = vmatprep.subr.bf16.mxu0 0
        %608 = vmatpush1.bf16.msra.mxu0 0
        %609 = vmatprep.subr.bf16.mxu0 0
        %610 = vmatpush1.bf16.msra.mxu0 0
        %611 = vmatprep.subr.bf16.mxu0 0
        %612 = vmatpush1.bf16.msra.mxu0 0
        %613 = vmatprep.subr.bf16.mxu0 0
        %614 = vmatpush1.bf16.msra.mxu0 0
        %615 = vmatprep.subr.bf16.mxu0 0
        %616 = vmatpush1.bf16.msra.mxu0 0
        %617 = vmatprep.subr.bf16.mxu0 0
        %618 = vmatpush1.bf16.msra.mxu0 0
        %619 = vmatprep.subr.bf16.mxu0 0
        %620 = vmatpush1.bf16.msra.mxu0 0
        %621 = vmatprep.subr.bf16.mxu0 0
        %622 = vmatpush1.bf16.msra.mxu0 %v605
        %623 = vmatprep.subr.bf16.mxu0 0
        %624 = vmatpush2.bf16.msra.mxu0 0
        %625 = vmatprep.subr.bf16.mxu0 0
        %626 = vmatpush2.bf16.msra.mxu0 0
        %627 = vmatprep.subr.bf16.mxu0 0
        %628 = vmatpush2.bf16.msra.mxu0 0
        %629 = vmatprep.subr.bf16.mxu0 0
        %630 = vmatpush2.bf16.msra.mxu0 0
        %631 = vmatprep.subr.bf16.mxu0 0
        %632 = vmatpush2.bf16.msra.mxu0 0
        %633 = vmatprep.subr.bf16.mxu0 0
        %634 = vmatpush2.bf16.msra.mxu0 0
        %635 = vmatprep.subr.bf16.mxu0 0
        %636 = vmatpush2.bf16.msra.mxu0 0
        %637 = vmatprep.subr.bf16.mxu0 0
        %638 = vmatpush2.bf16.msra.mxu0 0
        %639 = vmatprep.mubr.bf16.mxu0 0
        %640 = vmatmul.mubr.bf16.gmra.mxu0 %v602
        %v641 = vpop.f32.mrf.mxu0
        %v642 = vadd.f32 0.0, %v641
        %v643 = vpop.f32.mrf.mxu0
        %v644 = vpop.f32.mrf.mxu0
        %v645 = vpop.f32.mrf.mxu0
        %646 = vdwg.mxu0
        %647 = vrot.lane.b32.xlu0 %v310, 104
        %v648 = vpop.permute.xlu0 %647
        %649 = vrot.lane.b32.xlu0 %v311, 72
        %v650 = vpop.permute.xlu0 %649
        %v652 = vsel %vm315, %v648, 0
        %v655 = vsel %vm315, %v650, 0
        %657 = vmatprep.subr.bf16.mxu0 0
        %658 = vmatpush1.bf16.xpose.msra.mxu0 0
        %659 = vmatprep.subr.bf16.mxu0 0
        %660 = vmatpush1.bf16.xpose.msra.mxu0 0
        %661 = vmatprep.subr.bf16.mxu0 0
        %662 = vmatpush1.bf16.xpose.msra.mxu0 0
        %663 = vmatprep.subr.bf16.mxu0 0
        %664 = vmatpush1.bf16.xpose.msra.mxu0 0
        %665 = vmatprep.subr.bf16.mxu0 0
        %666 = vmatpush1.bf16.xpose.msra.mxu0 0
        %667 = vmatprep.subr.bf16.mxu0 0
        %668 = vmatpush1.bf16.xpose.msra.mxu0 0
        %669 = vmatprep.subr.bf16.mxu0 0
        %670 = vmatpush1.bf16.xpose.msra.mxu0 0
        %671 = vmatprep.subr.bf16.mxu0 0
        %672 = vmatpush1.bf16.xpose.msra.mxu0 %v655
        %673 = vmatprep.subr.bf16.mxu0 0
        %674 = vmatpush2.bf16.xpose.msra.mxu0 0
        %675 = vmatprep.subr.bf16.mxu0 0
        %676 = vmatpush2.bf16.xpose.msra.mxu0 0
        %677 = vmatprep.subr.bf16.mxu0 0
        %678 = vmatpush2.bf16.xpose.msra.mxu0 0
        %679 = vmatprep.subr.bf16.mxu0 0
        %680 = vmatpush2.bf16.xpose.msra.mxu0 0
        %681 = vmatprep.subr.bf16.mxu0 0
        %682 = vmatpush2.bf16.xpose.msra.mxu0 0
        %683 = vmatprep.subr.bf16.mxu0 0
        %684 = vmatpush2.bf16.xpose.msra.mxu0 0
        %685 = vmatprep.subr.bf16.mxu0 0
        %686 = vmatpush2.bf16.xpose.msra.mxu0 0
        %687 = vmatprep.subr.bf16.mxu0 0
        %688 = vmatpush2.bf16.xpose.msra.mxu0 0
        %689 = vmatprep.mubr.bf16.mxu0 0
        %690 = vmatmul.mubr.bf16.gmra.mxu0 %v652
        %v691 = vpop.f32.mrf.mxu0
        %v692 = vadd.f32 0.0, %v691
        %v693 = vpop.f32.mrf.mxu0
        %v694 = vpop.f32.mrf.mxu0
        %v695 = vpop.f32.mrf.mxu0
        %696 = vdwg.mxu0
        %v697 = vsel %vm308, %v692, -inf
        %v698 = vsel %vm315, %v697, -inf
        %699 = vmax.xlane.f32.xlu0 %v698
        %v700 = vpop.xlane.xlu0 %699
        %v701 = vsub.f32 %v697, %v700
        %v702 = vmul.f32 %v701, 1.442695
        %v703 = vpow.pop %v702
        %v704 = vsel %vm315, %v703, 0.0
        %705 = vadd.xlane.f32.xlu0 %v704
        %v706 = vpop.xlane.xlu0 %705
        %v707 = vrcp.pop %v706
        %v708 = vmul.f32 %v703, %v707
        %v709 = vpack.c.bf16 %v708, %v708
        %710 = vrot.lane.b32.xlu0 %v311, 40
        %v711 = vpop.permute.xlu0 %710
        %v713 = vsel %vm315, %v709, 0
        %v716 = vsel %vm380, %v711, 0
        %718 = vmatprep.subr.bf16.mxu0 0
        %719 = vmatpush1.bf16.msra.mxu0 0
        %720 = vmatprep.subr.bf16.mxu0 0
        %721 = vmatpush1.bf16.msra.mxu0 0
        %722 = vmatprep.subr.bf16.mxu0 0
        %723 = vmatpush1.bf16.msra.mxu0 0
        %724 = vmatprep.subr.bf16.mxu0 0
        %725 = vmatpush1.bf16.msra.mxu0 0
        %726 = vmatprep.subr.bf16.mxu0 0
        %727 = vmatpush1.bf16.msra.mxu0 0
        %728 = vmatprep.subr.bf16.mxu0 0
        %729 = vmatpush1.bf16.msra.mxu0 0
        %730 = vmatprep.subr.bf16.mxu0 0
        %731 = vmatpush1.bf16.msra.mxu0 0
        %732 = vmatprep.subr.bf16.mxu0 0
        %733 = vmatpush1.bf16.msra.mxu0 %v716
        %734 = vmatprep.subr.bf16.mxu0 0
        %735 = vmatpush2.bf16.msra.mxu0 0
        %736 = vmatprep.subr.bf16.mxu0 0
        %737 = vmatpush2.bf16.msra.mxu0 0
        %738 = vmatprep.subr.bf16.mxu0 0
        %739 = vmatpush2.bf16.msra.mxu0 0
        %740 = vmatprep.subr.bf16.mxu0 0
        %741 = vmatpush2.bf16.msra.mxu0 0
        %742 = vmatprep.subr.bf16.mxu0 0
        %743 = vmatpush2.bf16.msra.mxu0 0
        %744 = vmatprep.subr.bf16.mxu0 0
        %745 = vmatpush2.bf16.msra.mxu0 0
        %746 = vmatprep.subr.bf16.mxu0 0
        %747 = vmatpush2.bf16.msra.mxu0 0
        %748 = vmatprep.subr.bf16.mxu0 0
        %749 = vmatpush2.bf16.msra.mxu0 0
        %750 = vmatprep.mubr.bf16.mxu0 0
        %751 = vmatmul.mubr.bf16.gmra.mxu0 %v713
        %v752 = vpop.f32.mrf.mxu0
        %v753 = vadd.f32 0.0, %v752
        %v754 = vpop.f32.mrf.mxu0
        %v755 = vpop.f32.mrf.mxu0
        %v756 = vpop.f32.mrf.mxu0
        %757 = vdwg.mxu0
        %759 = vrot.lane.b32.xlu0 %v531, 8
        %v760 = vpop.permute.xlu0 %759
        %763 = vrot.lane.b32.xlu0 %v642, 16
        %v764 = vpop.permute.xlu0 %763
        %767 = vrot.lane.b32.xlu0 %v753, 24
        %v768 = vpop.permute.xlu0 %767
        %v770 = vsel %vm315, %v419, %v760
        %vm771 = vcmask 130048
        %v772 = vsel %vm771, %v770, %v764
        %vm773 = vcmask 195584
        %v774 = vsel %vm773, %v772, %v768
        %v775 = vpack.c.bf16 %v774, %v774
        %v776 = vld [vmem:[#allocation7] sm:$0xf]
        %v777 = vld [vmem:[#allocation7 + $0x4] sm:$0xf]
        %v778 = vld [vmem:[#allocation7 + $0x8] sm:$0xf]
        %v779 = vld [vmem:[#allocation7 + $0xc] sm:$0xf]
        %v780 = vld [vmem:[%s3] sm:$0x1]
        %v782 = vlaneseq
        %v783 = vshrl.u32 %v782, 7
        %v784 = vsub.s32 0, %v783
        %v785 = vrot.slane %v780, %v784
        %v791 = vunpack.c.l.b16 %v776
        %v792 = vunpack.c.l.b16 %v777
        %v793 = vunpack.c.l.b16 %v778
        %v794 = vunpack.c.l.b16 %v779
        %v795 = vpack.c.b16 %v792, %v791
        %v796 = vpack.c.b16 %v794, %v793
        %v800 = vsel %vm260, %v775, 0
        %802 = vmatprep.subr.bf16.mxu0 0
        %803 = vmatpush1.bf16.msra.mxu0 0
        %804 = vmatprep.subr.bf16.mxu0 0
        %805 = vmatpush1.bf16.msra.mxu0 0
        %806 = vmatprep.subr.bf16.mxu0 0
        %807 = vmatpush1.bf16.msra.mxu0 0
        %808 = vmatprep.subr.bf16.mxu0 0
        %809 = vmatpush1.bf16.msra.mxu0 0
        %810 = vmatprep.subr.bf16.mxu0 0
        %811 = vmatpush1.bf16.msra.mxu0 0
        %812 = vmatprep.subr.bf16.mxu0 0
        %813 = vmatpush1.bf16.msra.mxu0 0
        %814 = vmatprep.subr.bf16.mxu0 0
        %815 = vmatpush1.bf16.msra.mxu0 %v796
        %816 = vmatprep.subr.bf16.mxu0 0
        %817 = vmatpush1.bf16.msra.mxu0 %v795
        %818 = vmatprep.subr.bf16.mxu0 0
        %819 = vmatpush2.bf16.msra.mxu0 0
        %820 = vmatprep.subr.bf16.mxu0 0
        %821 = vmatpush2.bf16.msra.mxu0 0
        %822 = vmatprep.subr.bf16.mxu0 0
        %823 = vmatpush2.bf16.msra.mxu0 0
        %824 = vmatprep.subr.bf16.mxu0 0
        %825 = vmatpush2.bf16.msra.mxu0 0
        %826 = vmatprep.subr.bf16.mxu0 0
        %827 = vmatpush2.bf16.msra.mxu0 0
        %828 = vmatprep.subr.bf16.mxu0 0
        %829 = vmatpush2.bf16.msra.mxu0 0
        %830 = vmatprep.subr.bf16.mxu0 0
        %831 = vmatpush2.bf16.msra.mxu0 0
        %832 = vmatprep.subr.bf16.mxu0 0
        %833 = vmatpush2.bf16.msra.mxu0 0
        %834 = vmatprep.mubr.bf16.mxu0 0
        %835 = vmatmul.mubr.bf16.gmra.mxu0 %v800
        %v836 = vpop.f32.mrf.mxu0
        %v837 = vadd.f32 %v785, %v836
        %v838 = vpop.f32.mrf.mxu0
        %v839 = vpop.f32.mrf.mxu0
        %v840 = vpop.f32.mrf.mxu0
        %841 = vdwg.mxu0
        %842 = vst.msk [vmem:[%s241] sm:$0xff] %vm260, %v837
        %s843 = sand.u32 %s119, 1
        %s844 = scalar_lea.sflag [#allocation4], %s843
        %s845 = sand.u32 %s119, 1
        %s846 = smul.addr %s845, 8
        %s847 = scalar_lea.vmem [#allocation8], %s846
        // Predicated region
        $region49: #{tpu_custom_call.1} parent=35 // pred_check
          %p848 = pneg %p129
        $region50: #{tpu_custom_call.1} parent=35 // pred_check_branch
          %850 = sbr.rel (%p848) target = $region52
        $region51: #{tpu_custom_call.1} parent=35 // pred_region
          %s852 = ssub.s32 128, 128
          %853 = vsyncadd %s844, %s852
          %s854 = smul.addr %s22, 128
          %s855 = scalar_lea.hbm %s4, %s854
          %s857 = sshll.u32 %s847, 4
          %s858 = int_to_ptr.vmem [resolvable:$true] %s857
          %860 = dma.vmem_to_hbm [thread:$0]  %s858, 128, %s855, %s844
        $region52: #{tpu_custom_call.1} parent=35 // pred_fallthru
          _
      $region36: #{tpu_custom_call.1} parent=5 // pred_fallthru
        _
      %p861 = scmp.le.s32.totalorder 2, %s17
      // Predicated region
      $region53: #{tpu_custom_call.1} parent=5 // pred_check
        %p862 = pneg %p861
      $region54: #{tpu_custom_call.1} parent=5 // pred_check_branch
        %864 = sbr.rel (%p862) target = $region56
      $region55: #{tpu_custom_call.1} parent=5 // pred_region
        %s865 = ssub.s32 %s17, 2
        // Predicated region
        $region57: #{tpu_custom_call.1} parent=55 // pred_check
          %p866 = pneg %p135
        $region58: #{tpu_custom_call.1} parent=55 // pred_check_branch
          %868 = sbr.rel (%p866) target = $region60
        $region59: #{tpu_custom_call.1} parent=55 // pred_region
          %s869 = sand.u32 %s120, 1
          %s870 = scalar_lea.sflag [#allocation4], %s869
          %s871 = sand.u32 %s120, 1
          %s872 = smul.addr %s871, 8
          %s873 = scalar_lea.vmem [#allocation8], %s872
          %874 = dma.done %s870, 128
        $region60: #{tpu_custom_call.1} parent=55 // pred_fallthru
          _
      $region56: #{tpu_custom_call.1} parent=5 // pred_fallthru
        _
    $region6: #{tpu_custom_call.1} parent=1 // loop_footer
      %s21 = sadd.s32 1, %s17
    $region7: #{tpu_custom_call.1} parent=1 // loop_footer_branch
      %16 = sbr.rel target = $region3
    $region8: #{tpu_custom_call.1} parent=1 // loop_exit
      _
    %875 = vsyncpa [#allocation3], 1
    %s876 = scalar_lea.sflag [#allocation3], 1
    %877 = vsyncpa %s876, 1
    %878 = vsyncpa [#allocation6], 1
    %879 = vsyncpa [#allocation4], 1
    %s880 = scalar_lea.sflag [#allocation4], 1
    %881 = vsyncpa %s880, 1

</llo_original>
